<compile_context>
chip_gen: v5e
topology: v5e:2x2
jax: 0.10.0
libtpu: 0.0.40
codegen_flags: <defaults>
</compile_context>

<pallas_src>
import jax
import jax.numpy as jnp
from jax.experimental import pallas as pl
from jax.experimental.pallas import tpu as pltpu


def _round_up8(n):
    return -(-n // 8) * 8


def _param_layout(f_in, hidden, dim):
    """Sublane-aligned (multiple-of-8) row offsets for the packed parameter slab."""
    w1_off = 0
    b1_off = _round_up8(f_in)
    w2_off = b1_off + 8
    b2_off = w2_off + _round_up8(hidden)
    rows = b2_off + 8
    cols = max(hidden, dim)
    return w1_off, b1_off, w2_off, b2_off, rows, cols


def _pack_params(w1, b1, w2, b2):
    """Pack (w1, b1, w2, b2) into a single padded f32 slab (do this once at init time)."""
    f_in, hidden = w1.shape
    dim = w2.shape[1]
    w1_off, b1_off, w2_off, b2_off, rows, cols = _param_layout(f_in, hidden, dim)
    slab = jnp.zeros((rows, cols), jnp.float32)
    slab = slab.at[w1_off:w1_off + f_in, :hidden].set(w1)
    slab = slab.at[b1_off, :hidden].set(b1.reshape(-1))
    slab = slab.at[w2_off:w2_off + hidden, :dim].set(w2)
    slab = slab.at[b2_off, :dim].set(b2.reshape(-1))
    return slab


def _make_gcn_kernel(f_in, hidden, dim):
    """Builds the fused two-layer GCN kernel (everything resident in VMEM, all f32)."""
    w1_off, b1_off, w2_off, b2_off, _, _ = _param_layout(f_in, hidden, dim)

    def kernel(feat_ref, adj_ref, params_ref, x1_ref, logp_ref):
        adj = adj_ref[...]
        feat = feat_ref[...]

        # Static, sublane-aligned slices of the packed parameter slab.
        w1 = params_ref[w1_off:w1_off + f_in, :hidden]          # (F, H)
        b1 = params_ref[b1_off:b1_off + 1, :hidden]             # (1, H)
        w2 = params_ref[w2_off:w2_off + hidden, :dim]           # (H, D)
        b2 = params_ref[b2_off:b2_off + 1, :dim]                # (1, D)

        # ---- layer 1 (reassociated: F < H) ----------------------------------
        # (adj @ feat) @ W1 == adj @ (feat @ W1), with fewer MXU FLOPs.
        af = jnp.dot(adj, feat, preferred_element_type=jnp.float32)
        h1 = jnp.dot(af, w1, preferred_element_type=jnp.float32) + b1
        x1 = jnp.maximum(h1, 0.0)                                # activation == 'relu'
        x1_ref[...] = x1

        # dropout: module evaluated with training=False -> identity.

        # ---- layer 2 (H > D: keep adj @ (x1 @ W2)) ---------------------------
        s2 = jnp.dot(x1, w2, preferred_element_type=jnp.float32)
        h2 = jnp.dot(adj, s2, preferred_element_type=jnp.float32) + b2

        # ---- numerically stable log_softmax over dim=1 -----------------------
        m = jnp.max(h2, axis=1, keepdims=True)
        shifted = h2 - m
        lse = jnp.log(jnp.sum(jnp.exp(shifted), axis=1, keepdims=True))
        logp_ref[...] = shifted - lse

    return kernel


def gcn_forward(feature, adj, params, *, f_in, hidden, dim):
    """Fused GCN forward. Returns (x1, log_probs) matching the PyTorch module.

    `params` is the pre-packed slab from `_pack_params` (build it once at init).
    """
    N = feature.shape[0]
    prows, pcols = params.shape

    vmem = pl.BlockSpec(memory_space=pltpu.MemorySpace.VMEM)

    cost = pl.CostEstimate(
        flops=2 * (N * N * f_in + N * f_in * hidden + N * hidden * dim + N * N * dim),
        transcendentals=N * dim,                                  # exp in log_softmax
        bytes_accessed=4 * (N * f_in + N * N + prows * pcols + N * hidden + N * dim),
    )

    x1, log_probs = pl.pallas_call(
        _make_gcn_kernel(f_in, hidden, dim),
        out_shape=(jax.ShapeDtypeStruct((N, hidden), jnp.float32),
                   jax.ShapeDtypeStruct((N, dim), jnp.float32)),
        in_specs=[vmem, vmem, vmem],
        out_specs=(vmem, vmem),
        cost_estimate=cost,
    )(feature, adj, params)

    return x1, log_probs


def _init_gcnconv_params(key, in_features, out_features):
    """Deterministic uniform(-stdv, stdv) init like the reference GCNConv."""
    stdv = 1.0 / jnp.sqrt(jnp.float32(out_features))
    kw, kb = jax.random.split(key)
    w = jax.random.uniform(kw, (in_features, out_features), jnp.float32, -stdv, stdv)
    b = jax.random.uniform(kb, (1, out_features), jnp.float32, -stdv, stdv)
    return w, b


def _normalized_adj(key, n):
    """Dense symmetric normalized adjacency: D^-1/2 (A + I) D^-1/2."""
    a = (jax.random.uniform(key, (n, n)) < 0.2).astype(jnp.float32)
    a = jnp.maximum(a, a.T)                       # symmetrize
    a = a + jnp.eye(n, dtype=jnp.float32)         # self-loops
    a = jnp.minimum(a, 1.0)
    deg = jnp.sum(a, axis=1)
    d_inv_sqrt = 1.0 / jnp.sqrt(deg)
    return a * d_inv_sqrt[:, None] * d_inv_sqrt[None, :]


def _ref_forward(feature, adj, w1, b1, w2, b2):
    """Pure-JAX f32 reference matching the PyTorch module."""
    h1 = jnp.dot(jnp.dot(adj, feature), w1) + b1
    x1 = jnp.maximum(h1, 0.0)
    h2 = jnp.dot(adj, jnp.dot(x1, w2)) + b2
    return x1, jax.nn.log_softmax(h2, axis=1)


if __name__ == "__main__":
    # Small shapes consistent with the module's forward:
    #   num_feature=16, hidden_size=32, dim=8, N=32 nodes
    N, F_IN, HIDDEN, DIM = 32, 16, 32, 8

    key = jax.random.PRNGKey(0)
    k_feat, k_adj, k_c1, k_c2 = jax.random.split(key, 4)

    feature = jax.random.normal(k_feat, (N, F_IN), jnp.float32)
    adj = _normalized_adj(k_adj, N)
    w1, b1 = _init_gcnconv_params(k_c1, F_IN, HIDDEN)
    w2, b2 = _init_gcnconv_params(k_c2, HIDDEN, DIM)

    # Pack the constant parameters ONCE (init time) into a single padded slab.
    params = _pack_params(w1, b1, w2, b2)

    x1, log_probs = gcn_forward(feature, adj, params,
                                f_in=F_IN, hidden=HIDDEN, dim=DIM)
    jax.block_until_ready((x1, log_probs))

    # Check against the pure-f32 PyTorch-equivalent math.
    ref_x1, ref_lp = _ref_forward(feature, adj, w1, b1, w2, b2)
    assert x1.shape == (N, HIDDEN) and log_probs.shape == (N, DIM)
    assert jnp.allclose(x1, ref_x1, atol=1e-3, rtol=1e-3)
    assert jnp.allclose(log_probs, ref_lp, atol=1e-3, rtol=1e-3)
    # log_softmax rows must (numerically) sum to 1 in prob space.
    assert jnp.allclose(jnp.sum(jnp.exp(log_probs), axis=1), 1.0, atol=1e-4)

    print("KERNEL_OK")
</pallas_src>

<mosaic_0001>
module attributes {stable_mosaic.version = 11 : i64} {
  func.func @kernel(%arg0: memref<32x16xf32, #tpu.memory_space<vmem>>, %arg1: memref<32x32xf32, #tpu.memory_space<vmem>>, %arg2: memref<64x32xf32, #tpu.memory_space<vmem>>, %arg3: memref<32x32xf32, #tpu.memory_space<vmem>>, %arg4: memref<32x8xf32, #tpu.memory_space<vmem>>) attributes {dimension_semantics = [], scalar_prefetch = 0 : i64, scratch_operands = 0 : i64, tpu.core_type = #tpu.core_type<tc>} {
    %c0 = arith.constant 0 : index
    %c0_0 = arith.constant 0 : index
    %0 = vector.load %arg1[%c0, %c0_0] : memref<32x32xf32, #tpu.memory_space<vmem>>, vector<32x32xf32>
    %c0_1 = arith.constant 0 : index
    %c0_2 = arith.constant 0 : index
    %1 = vector.load %arg0[%c0_1, %c0_2] : memref<32x16xf32, #tpu.memory_space<vmem>>, vector<32x16xf32>
    %c0_3 = arith.constant 0 : index
    %c0_4 = arith.constant 0 : index
    %2 = vector.load %arg2[%c0_3, %c0_4] : memref<64x32xf32, #tpu.memory_space<vmem>>, vector<16x32xf32>
    %c16 = arith.constant 16 : index
    %c0_5 = arith.constant 0 : index
    %3 = vector.load %arg2[%c16, %c0_5] : memref<64x32xf32, #tpu.memory_space<vmem>>, vector<1x32xf32>
    %c24 = arith.constant 24 : index
    %c0_6 = arith.constant 0 : index
    %4 = vector.load %arg2[%c24, %c0_6] : memref<64x32xf32, #tpu.memory_space<vmem>>, vector<32x8xf32>
    %c56 = arith.constant 56 : index
    %c0_7 = arith.constant 0 : index
    %5 = vector.load %arg2[%c56, %c0_7] : memref<64x32xf32, #tpu.memory_space<vmem>>, vector<1x8xf32>
    %cst = arith.constant dense<0.000000e+00> : vector<32x16xf32>
    %6 = tpu.matmul %0, %1, %cst {dimension_numbers = #tpu.dot_dimension_numbers<[1], [0], [0], [1], [0, 0, 1, 1], [], []>} : vector<32x32xf32>, vector<32x16xf32>, vector<32x16xf32> -> vector<32x16xf32>
    %cst_8 = arith.constant dense<0.000000e+00> : vector<32x32xf32>
    %7 = tpu.matmul %6, %2, %cst_8 {dimension_numbers = #tpu.dot_dimension_numbers<[1], [0], [0], [1], [0, 0, 1, 1], [], []>} : vector<32x16xf32>, vector<16x32xf32>, vector<32x32xf32> -> vector<32x32xf32>
    %8 = vector.broadcast %3 : vector<1x32xf32> to vector<32x32xf32>
    %9 = arith.addf %7, %8 : vector<32x32xf32>
    %cst_9 = arith.constant 0.000000e+00 : f32
    %10 = vector.broadcast %cst_9 : f32 to vector<32x32xf32>
    %11 = arith.maximumf %9, %10 : vector<32x32xf32>
    %c0_10 = arith.constant 0 : index
    %c0_11 = arith.constant 0 : index
    %12 = vector.load %arg3[%c0_10, %c0_11] : memref<32x32xf32, #tpu.memory_space<vmem>>, vector<32x32xf32>
    tpu.vector_store %arg3[%c0_10, %c0_11], %11 {strides = array<i32>} : memref<32x32xf32, #tpu.memory_space<vmem>>, vector<32x32xf32>,
    %cst_12 = arith.constant dense<0.000000e+00> : vector<32x8xf32>
    %13 = tpu.matmul %11, %4, %cst_12 {dimension_numbers = #tpu.dot_dimension_numbers<[1], [0], [0], [1], [0, 0, 1, 1], [], []>} : vector<32x32xf32>, vector<32x8xf32>, vector<32x8xf32> -> vector<32x8xf32>
    %cst_13 = arith.constant dense<0.000000e+00> : vector<32x8xf32>
    %14 = tpu.matmul %0, %13, %cst_13 {dimension_numbers = #tpu.dot_dimension_numbers<[1], [0], [0], [1], [0, 0, 1, 1], [], []>} : vector<32x32xf32>, vector<32x8xf32>, vector<32x8xf32> -> vector<32x8xf32>
    %15 = vector.broadcast %5 : vector<1x8xf32> to vector<32x8xf32>
    %16 = arith.addf %14, %15 : vector<32x8xf32>
    %cst_14 = arith.constant dense<0xFF800000> : vector<32xf32>
    %17 = vector.multi_reduction <maximumf>, %16, %cst_14 [1] : vector<32x8xf32> to vector<32xf32>
    %18 = vector.shape_cast %17 : vector<32xf32> to vector<32x1xf32>
    %19 = vector.broadcast %18 : vector<32x1xf32> to vector<32x8xf32>
    %20 = arith.subf %16, %19 : vector<32x8xf32>
    %21 = math.exp %20 : vector<32x8xf32>
    %cst_15 = arith.constant dense<0.000000e+00> : vector<32xf32>
    %22 = vector.multi_reduction <add>, %21, %cst_15 [1] : vector<32x8xf32> to vector<32xf32>
    %23 = vector.shape_cast %22 : vector<32xf32> to vector<32x1xf32>
    %24 = math.log %23 : vector<32x1xf32>
    %25 = vector.broadcast %24 : vector<32x1xf32> to vector<32x8xf32>
    %26 = arith.subf %20, %25 : vector<32x8xf32>
    %c0_16 = arith.constant 0 : index
    %c0_17 = arith.constant 0 : index
    %27 = vector.load %arg4[%c0_16, %c0_17] : memref<32x8xf32, #tpu.memory_space<vmem>>, vector<32x8xf32>
    tpu.vector_store %arg4[%c0_16, %c0_17], %26 {strides = array<i32>} : memref<32x8xf32, #tpu.memory_space<vmem>>, vector<32x8xf32>,
    return
  }
}

</mosaic_0001>

<llo_original>
// kernel: tpu_custom_call.1
$region0: #{tpu_custom_call.1}
  #allocation0 [shape = 'u32[]', space=smem, size = 0x4, offset = 0x4, fixed_abs, tag = 'smem constant byte address 0x4 - core index']
  #allocation1 [shape = 'u32[72,128]{1,0:T(1,128)}', space=vmem, size = 0x9000, scoped, tag = 'internal scratch']
  %s0 = inlined_call_operand.vmem [shape: f32[32,16], index: 0, kind: input, shape index: {}]
  %s1 = inlined_call_operand.vmem [shape: f32[32,32], index: 1, kind: input, shape index: {}]
  %s2 = inlined_call_operand.vmem [shape: f32[64,32], index: 2, kind: input, shape index: {}]
  %s3 = inlined_call_operand.hbm [shape: f32[32,32], index: 3, kind: output, shape index: {0}]
  %s4 = inlined_call_operand.vmem [shape: f32[32,8], index: 4, kind: output, shape index: {1}]
  %5 = xla_tuple %s3, %s4
  %s6 = sld [smem:[#allocation0]]
  $region30: #{tpu_custom_call.1} parent=0
    _
  %s8 = ssub.s32 1, %s6
  %s9 = scalar_select 0, %s8, %s6
  $region1: #{tpu_custom_call.1} parent=0
    #allocation2 [shape = 'u8[16384]{0}', space=vmem, size = 0x4000, scoped, tag = 'output window, operand 0, single buffered']
    #allocation3 [shape = 's32[1]{0}', space=sflag, size = 0x4, scoped, tag = 'scoped memory for tpu_custom_call.1']
    %10 = vsyncpa [#allocation3], 0
    // Predicated region
    $region2: #{tpu_custom_call.1} parent=1 // pred_check
      _
    $region3: #{tpu_custom_call.1} parent=1 // pred_check_branch
      %12 = sbr.rel (0) target = $region5
    $region4: #{tpu_custom_call.1} parent=1 // pred_region
      _
    $region5: #{tpu_custom_call.1} parent=1 // pred_fallthru
      _
    // Predicated region
    $region6: #{tpu_custom_call.1} parent=1 // pred_check
      _
    $region7: #{tpu_custom_call.1} parent=1 // pred_check_branch
      %14 = sbr.rel (0) target = $region9
    $region8: #{tpu_custom_call.1} parent=1 // pred_region
      _
    $region9: #{tpu_custom_call.1} parent=1 // pred_fallthru
      _
    // Predicated region
    $region10: #{tpu_custom_call.1} parent=1 // pred_check
      _
    $region11: #{tpu_custom_call.1} parent=1 // pred_check_branch
      %16 = sbr.rel (0) target = $region13
    $region12: #{tpu_custom_call.1} parent=1 // pred_region
      _
    $region13: #{tpu_custom_call.1} parent=1 // pred_fallthru
      _
    %v17 = vld [vmem:[%s1] sm:$0xff]
    %v18 = vld [vmem:[%s1 + $0x8] sm:$0xff]
    %v19 = vld [vmem:[%s1 + $0x10] sm:$0xff]
    %v20 = vld [vmem:[%s1 + $0x18] sm:$0xff]
    %v21 = vld [vmem:[%s0] sm:$0xff]
    %v22 = vld [vmem:[%s0 + $0x8] sm:$0xff]
    %v23 = vld [vmem:[%s0 + $0x10] sm:$0xff]
    %v24 = vld [vmem:[%s0 + $0x18] sm:$0xff]
    %v25 = vld [vmem:[%s2] sm:$0xff]
    %v26 = vld [vmem:[%s2 + $0x8] sm:$0xff]
    %v27 = vld [vmem:[%s2 + $0x10] sm:$0x1]
    %v28 = vld [vmem:[%s2 + $0x18] sm:$0xff]
    %v29 = vld [vmem:[%s2 + $0x20] sm:$0xff]
    %v30 = vld [vmem:[%s2 + $0x28] sm:$0xff]
    %v31 = vld [vmem:[%s2 + $0x30] sm:$0xff]
    %v32 = vld [vmem:[%s2 + $0x38] sm:$0x1]
    %vm33 = vcmask 261120
    %v35 = vsel %vm33, %v17, 0
    %v38 = vsel %vm33, %v18, 0
    %v41 = vsel %vm33, %v19, 0
    %v44 = vsel %vm33, %v20, 0
    %46 = vmatpush.msra.mxu0 0.0
    %47 = vmatpush.msra.mxu0 0.0
    %48 = vmatpush.msra.mxu0 0.0
    %49 = vmatpush.msra.mxu0 0.0
    %50 = vmatpush.msra.mxu0 0.0
    %51 = vmatpush.msra.mxu0 0.0
    %52 = vmatpush.msra.mxu0 0.0
    %53 = vmatpush.msra.mxu0 0.0
    %54 = vmatpush.msra.mxu0 0.0
    %55 = vmatpush.msra.mxu0 0.0
    %56 = vmatpush.msra.mxu0 0.0
    %57 = vmatpush.msra.mxu0 0.0
    %58 = vmatpush.msra.mxu0 %v24
    %59 = vmatpush.msra.mxu0 %v23
    %60 = vmatpush.msra.mxu0 %v22
    %61 = vmatpush.msra.mxu0 %v21
    %62 = vmatmul.f32.gmra.mxu0 %v35
    %v63 = vpop.f32.mrf.mxu0
    %v64 = vadd.f32 0.0, %v63
    %65 = vmatmul.f32.gmra.mxu0 %v38
    %v66 = vpop.f32.mrf.mxu0
    %v67 = vadd.f32 0.0, %v66
    %68 = vmatmul.f32.gmra.mxu0 %v41
    %v69 = vpop.f32.mrf.mxu0
    %v70 = vadd.f32 0.0, %v69
    %71 = vmatmul.f32.gmra.mxu0 %v44
    %v72 = vpop.f32.mrf.mxu0
    %v73 = vadd.f32 0.0, %v72
    %74 = vdwg.mxu0
    %v75 = vperm.slane %v27, 0
    %vm76 = vcmask 130048
    %v78 = vsel %vm76, %v64, 0
    %v81 = vsel %vm76, %v67, 0
    %v84 = vsel %vm76, %v70, 0
    %v87 = vsel %vm76, %v73, 0
    %89 = vmatpush.msra.mxu0 0.0
    %90 = vmatpush.msra.mxu0 0.0
    %91 = vmatpush.msra.mxu0 0.0
    %92 = vmatpush.msra.mxu0 0.0
    %93 = vmatpush.msra.mxu0 0.0
    %94 = vmatpush.msra.mxu0 0.0
    %95 = vmatpush.msra.mxu0 0.0
    %96 = vmatpush.msra.mxu0 0.0
    %97 = vmatpush.msra.mxu0 0.0
    %98 = vmatpush.msra.mxu0 0.0
    %99 = vmatpush.msra.mxu0 0.0
    %100 = vmatpush.msra.mxu0 0.0
    %101 = vmatpush.msra.mxu0 0.0
    %102 = vmatpush.msra.mxu0 0.0
    %103 = vmatpush.msra.mxu0 %v26
    %104 = vmatpush.msra.mxu0 %v25
    %105 = vmatmul.f32.gmra.mxu0 %v78
    %v106 = vpop.f32.mrf.mxu0
    %v107 = vadd.f32 %v75, %v106
    %108 = vmatmul.f32.gmra.mxu0 %v81
    %v109 = vpop.f32.mrf.mxu0
    %v110 = vadd.f32 %v75, %v109
    %111 = vmatmul.f32.gmra.mxu0 %v84
    %v112 = vpop.f32.mrf.mxu0
    %v113 = vadd.f32 %v75, %v112
    %114 = vmatmul.f32.gmra.mxu0 %v87
    %v115 = vpop.f32.mrf.mxu0
    %v116 = vadd.f32 %v75, %v115
    %117 = vdwg.mxu0
    %v118 = vmax.f32 %v107, 0.0
    %v119 = vmax.f32 %v110, 0.0
    %v120 = vmax.f32 %v113, 0.0
    %v121 = vmax.f32 %v116, 0.0
    %122 = vst.msk [vmem:[#allocation2] sm:$0xff] %vm33, %v118
    %123 = vst.msk [vmem:[#allocation2 + $0x8] sm:$0xff] %vm33, %v119
    %124 = vst.msk [vmem:[#allocation2 + $0x10] sm:$0xff] %vm33, %v120
    %125 = vst.msk [vmem:[#allocation2 + $0x18] sm:$0xff] %vm33, %v121
    %v127 = vsel %vm33, %v118, 0
    %v130 = vsel %vm33, %v119, 0
    %v133 = vsel %vm33, %v120, 0
    %v136 = vsel %vm33, %v121, 0
    %138 = vmatpush.msra.mxu0 0.0
    %139 = vmatpush.msra.mxu0 0.0
    %140 = vmatpush.msra.mxu0 0.0
    %141 = vmatpush.msra.mxu0 0.0
    %142 = vmatpush.msra.mxu0 0.0
    %143 = vmatpush.msra.mxu0 0.0
    %144 = vmatpush.msra.mxu0 0.0
    %145 = vmatpush.msra.mxu0 0.0
    %146 = vmatpush.msra.mxu0 0.0
    %147 = vmatpush.msra.mxu0 0.0
    %148 = vmatpush.msra.mxu0 0.0
    %149 = vmatpush.msra.mxu0 0.0
    %150 = vmatpush.msra.mxu0 %v31
    %151 = vmatpush.msra.mxu0 %v30
    %152 = vmatpush.msra.mxu0 %v29
    %153 = vmatpush.msra.mxu0 %v28
    %154 = vmatmul.f32.gmra.mxu0 %v127
    %v155 = vpop.f32.mrf.mxu0
    %v156 = vadd.f32 0.0, %v155
    %157 = vmatmul.f32.gmra.mxu0 %v130
    %v158 = vpop.f32.mrf.mxu0
    %v159 = vadd.f32 0.0, %v158
    %160 = vmatmul.f32.gmra.mxu0 %v133
    %v161 = vpop.f32.mrf.mxu0
    %v162 = vadd.f32 0.0, %v161
    %163 = vmatmul.f32.gmra.mxu0 %v136
    %v164 = vpop.f32.mrf.mxu0
    %v165 = vadd.f32 0.0, %v164
    %166 = vdwg.mxu0
    %v167 = vperm.slane %v32, 0
    %168 = vmatpush.msra.mxu0 0.0
    %169 = vmatpush.msra.mxu0 0.0
    %170 = vmatpush.msra.mxu0 0.0
    %171 = vmatpush.msra.mxu0 0.0
    %172 = vmatpush.msra.mxu0 0.0
    %173 = vmatpush.msra.mxu0 0.0
    %174 = vmatpush.msra.mxu0 0.0
    %175 = vmatpush.msra.mxu0 0.0
    %176 = vmatpush.msra.mxu0 0.0
    %177 = vmatpush.msra.mxu0 0.0
    %178 = vmatpush.msra.mxu0 0.0
    %179 = vmatpush.msra.mxu0 0.0
    %180 = vmatpush.msra.mxu0 %v165
    %181 = vmatpush.msra.mxu0 %v162
    %182 = vmatpush.msra.mxu0 %v159
    %183 = vmatpush.msra.mxu0 %v156
    %184 = vmatmul.f32.gmra.mxu0 %v35
    %v185 = vpop.f32.mrf.mxu0
    %v186 = vadd.f32 %v167, %v185
    %187 = vmatmul.f32.gmra.mxu0 %v38
    %v188 = vpop.f32.mrf.mxu0
    %v189 = vadd.f32 %v167, %v188
    %190 = vmatmul.f32.gmra.mxu0 %v41
    %v191 = vpop.f32.mrf.mxu0
    %v192 = vadd.f32 %v167, %v191
    %193 = vmatmul.f32.gmra.mxu0 %v44
    %v194 = vpop.f32.mrf.mxu0
    %v195 = vadd.f32 %v167, %v194
    %196 = vdwg.mxu0
    %vm197 = vcmask 64512
    %v198 = vsel %vm197, %v186, -inf
    %199 = vmax.xlane.f32.xlu0 %v198
    %v200 = vpop.xlane.xlu0 %199
    %v201 = vsel %vm197, %v189, -inf
    %202 = vmax.xlane.f32.xlu0 %v201
    %v203 = vpop.xlane.xlu0 %202
    %v204 = vsel %vm197, %v192, -inf
    %205 = vmax.xlane.f32.xlu0 %v204
    %v206 = vpop.xlane.xlu0 %205
    %v207 = vsel %vm197, %v195, -inf
    %208 = vmax.xlane.f32.xlu0 %v207
    %v209 = vpop.xlane.xlu0 %208
    %v210 = vsub.f32 %v186, %v200
    %v211 = vsub.f32 %v189, %v203
    %v212 = vsub.f32 %v192, %v206
    %v213 = vsub.f32 %v195, %v209
    %v214 = vmul.f32 %v210, 1.442695
    %v215 = vpow.pop %v214
    %v216 = vmul.f32 %v211, 1.442695
    %v217 = vpow.pop %v216
    %v218 = vmul.f32 %v212, 1.442695
    %v219 = vpow.pop %v218
    %v220 = vmul.f32 %v213, 1.442695
    %v221 = vpow.pop %v220
    %v222 = vsel %vm197, %v215, 0.0
    %223 = vadd.xlane.f32.xlu0 %v222
    %v224 = vpop.xlane.xlu0 %223
    %v225 = vsel %vm197, %v217, 0.0
    %226 = vadd.xlane.f32.xlu0 %v225
    %v227 = vpop.xlane.xlu0 %226
    %v228 = vsel %vm197, %v219, 0.0
    %229 = vadd.xlane.f32.xlu0 %v228
    %v230 = vpop.xlane.xlu0 %229
    %v231 = vsel %vm197, %v221, 0.0
    %232 = vadd.xlane.f32.xlu0 %v231
    %v233 = vpop.xlane.xlu0 %232
    %v234 = vlog2.pop %v224
    %v235 = vmul.f32 %v234, 0.6931472
    %v236 = vlog2.pop %v227
    %v237 = vmul.f32 %v236, 0.6931472
    %v238 = vlog2.pop %v230
    %v239 = vmul.f32 %v238, 0.6931472
    %v240 = vlog2.pop %v233
    %v241 = vmul.f32 %v240, 0.6931472
    %v242 = vsub.f32 %v210, %v235
    %v243 = vsub.f32 %v211, %v237
    %v244 = vsub.f32 %v212, %v239
    %v245 = vsub.f32 %v213, %v241
    %246 = vst.msk [vmem:[%s4] sm:$0xff] %vm197, %v242
    %247 = vst.msk [vmem:[%s4 + $0x8] sm:$0xff] %vm197, %v243
    %248 = vst.msk [vmem:[%s4 + $0x10] sm:$0xff] %vm197, %v244
    %249 = vst.msk [vmem:[%s4 + $0x18] sm:$0xff] %vm197, %v245
    // Predicated region
    $region14: #{tpu_custom_call.1} parent=1 // pred_check
      _
    $region15: #{tpu_custom_call.1} parent=1 // pred_check_branch
      %251 = sbr.rel (0) target = $region17
    $region16: #{tpu_custom_call.1} parent=1 // pred_region
      %253 = vsyncadd [#allocation3], 0
      %s254 = sshll.u32 [#allocation2], 4
      %s255 = int_to_ptr.vmem [resolvable:$true] %s254
      %s256 = sshll.u32 %s3, 4
      %s257 = int_to_ptr.hbm [resolvable:$true] %s256
      %262 = dma.vmem_to_hbm [thread:$0]  %s255, 512, %s257, [#allocation3], 128, 128, 8
    $region17: #{tpu_custom_call.1} parent=1 // pred_fallthru
      _
    // Predicated region
    $region18: #{tpu_custom_call.1} parent=1 // pred_check
      _
    $region19: #{tpu_custom_call.1} parent=1 // pred_check_branch
      %264 = sbr.rel (0) target = $region21
    $region20: #{tpu_custom_call.1} parent=1 // pred_region
      _
    $region21: #{tpu_custom_call.1} parent=1 // pred_fallthru
      _
    // Predicated region
    $region22: #{tpu_custom_call.1} parent=1 // pred_check
      _
    $region23: #{tpu_custom_call.1} parent=1 // pred_check_branch
      %266 = sbr.rel (0) target = $region25
    $region24: #{tpu_custom_call.1} parent=1 // pred_region
      %268 = dma.done [#allocation3], 512
    $region25: #{tpu_custom_call.1} parent=1 // pred_fallthru
      _
    // Predicated region
    $region26: #{tpu_custom_call.1} parent=1 // pred_check
      _
    $region27: #{tpu_custom_call.1} parent=1 // pred_check_branch
      %270 = sbr.rel (0) target = $region29
    $region28: #{tpu_custom_call.1} parent=1 // pred_region
      _
    $region29: #{tpu_custom_call.1} parent=1 // pred_fallthru
      _
    %271 = vsyncpa [#allocation3], 1

</llo_original>
